<compile_context>
chip_gen: v5e
topology: v5e:2x2
jax: 0.10.0
libtpu: 0.0.40
codegen_flags: <defaults>
</compile_context>

<pallas_src>
import functools
import math

import jax
import jax.numpy as jnp
from jax.experimental import pallas as pl


def _info_kernel(x_ref, y_ref, w_ref, o_ref, *, scale):
    """Whole-problem kernel (no grid).

    x_ref: (B, S1, D)   y_ref: (B, S2, D)
    w_ref: (D, 3D)      fused, pre-transposed [Wq.T | Wk.T | Wv.T]
    o_ref: (B, S, D)    S = S1 + S2
    """
    B, S1, D = x_ref.shape
    S2 = y_ref.shape[1]
    S = S1 + S2

    # Build the (B*S, D) slab: per-batch [x_b ; y_b] stacked along the
    # sequence (sublane) axis, batches stacked on top of each other.  Pure
    # VMEM concat -- no HBM concat op, no transposes.
    rows = []
    for b in range(B):
        rows.append(x_ref[b])          # (S1, D)
        rows.append(y_ref[b])          # (S2, D)
    xc = jnp.concatenate(rows, axis=0)                                  # (B*S, D)

    # Single fused Q/K/V projection for all batches: one MXU matmul.
    qkv = jnp.dot(xc, w_ref[...], preferred_element_type=jnp.float32)  # (B*S, 3D)

    # Static lane slices (done once, outside the batch loop).
    q_all = qkv[:, 0:D]
    k_all = qkv[:, D:2 * D]
    v_all = qkv[:, 2 * D:3 * D]

    # Per-batch attention; B is tiny and static -> unrolled Python loop.
    for b in range(B):
        lo = b * S
        q = q_all[lo:lo + S, :]                                         # (S, D)
        k = k_all[lo:lo + S, :]
        v = v_all[lo:lo + S, :]

        # scores = Q @ K^T without any in-kernel transpose: contract the last
        # (lane) axis of both operands.
        s = jax.lax.dot_general(
            q, k, (((1,), (1,)), ((), ())),
            preferred_element_type=jnp.float32) * scale                 # (S, S)

        # Numerically-stable softmax over the last axis.
        m = jnp.max(s, axis=-1, keepdims=True)
        p = jnp.exp(s - m)
        p = p * pl.reciprocal(jnp.sum(p, axis=-1, keepdims=True), approx=False)

        o_ref[b] = jnp.dot(p, v, preferred_element_type=jnp.float32).astype(o_ref.dtype)


def fuse_qkv_weights(wq, wk, wv):
    """One-time (parameter-load-time) weight prep, hoisted out of the call path.

    wq/wk/wv: (D, D) in nn.Linear layout (out_features, in_features).
    Returns the fused, pre-transposed (D, 3D) tensor [Wq.T | Wk.T | Wv.T].
    """
    return jnp.concatenate([wq.T, wk.T, wv.T], axis=1)


@jax.jit
def infomation_layer(x, y, w_fused):
    """Pallas implementation of InfomationLayer.forward(x, y).

    x: (B, S1, D), y: (B, S2, D); w_fused: (D, 3D) from fuse_qkv_weights.
    Returns (B, S1+S2, D).
    """
    B, S1, D = x.shape
    S2 = y.shape[1]
    S = S1 + S2
    scale = 1.0 / math.sqrt(D)                     # out_dim == D

    kernel = functools.partial(_info_kernel, scale=scale)

    # Single invocation: whole arrays resident in VMEM (few KB), no grid, no
    # pipeline overhead, no padded output / wrapper slice.
    return pl.pallas_call(
        kernel,
        out_shape=jax.ShapeDtypeStruct((B, S, D), x.dtype),
    )(x, y, w_fused)


def infomation_layer_ref(x, y, wq, wk, wv):
    """Pure-JAX reference (mirrors the PyTorch forward exactly)."""
    xc = jnp.concatenate([x, y], axis=1)
    q = jnp.einsum("bsd,ed->bse", xc, wq)
    k = jnp.einsum("bsd,ed->bse", xc, wk)
    v = jnp.einsum("bsd,ed->bse", xc, wv)
    alpha = jnp.einsum("bqe,bke->bqk", q, k) / math.sqrt(xc.shape[-1])
    alpha = jax.nn.softmax(alpha, axis=2)
    return jnp.einsum("bqk,bke->bqe", alpha, v)


if __name__ == "__main__":
    # Module config (hidden_dim / window_size are unused in forward).
    hidden_dim = 32
    out_dim = 32
    window_size = 8

    B = 2
    S1 = 8   # length of x
    S2 = 8   # length of y

    key = jax.random.PRNGKey(0)
    kx, ky, kq, kk, kv = jax.random.split(key, 5)

    x = jax.random.normal(kx, (B, S1, out_dim), dtype=jnp.float32)
    y = jax.random.normal(ky, (B, S2, out_dim), dtype=jnp.float32)

    # Deterministic parameter init, nn.Linear-style shapes (out_dim, out_dim).
    bound = 1.0 / math.sqrt(out_dim)
    wq = jax.random.uniform(kq, (out_dim, out_dim), jnp.float32, -bound, bound)
    wk = jax.random.uniform(kk, (out_dim, out_dim), jnp.float32, -bound, bound)
    wv = jax.random.uniform(kv, (out_dim, out_dim), jnp.float32, -bound, bound)

    # One-time weight prep at "parameter load" time -- not in the per-call path.
    w_fused = jax.block_until_ready(fuse_qkv_weights(wq, wk, wv))

    out = infomation_layer(x, y, w_fused)
    out = jax.block_until_ready(out)

    ref = infomation_layer_ref(x, y, wq, wk, wv)
    assert out.shape == (B, S1 + S2, out_dim), out.shape
    assert jnp.allclose(out, ref, atol=1e-5, rtol=1e-5), "mismatch vs reference"

    print("KERNEL_OK")
</pallas_src>

<mosaic_0001>
module attributes {stable_mosaic.version = 11 : i64} {
  func.func @_info_kernel(%arg0: memref<2x8x32xf32, #tpu.memory_space<vmem>>, %arg1: memref<2x8x32xf32, #tpu.memory_space<vmem>>, %arg2: memref<32x96xf32, #tpu.memory_space<vmem>>, %arg3: memref<2x16x32xf32, #tpu.memory_space<vmem>>) attributes {dimension_semantics = [], scalar_prefetch = 0 : i64, scratch_operands = 0 : i64, tpu.core_type = #tpu.core_type<tc>} {
    %c0 = arith.constant 0 : index
    %c0_0 = arith.constant 0 : index
    %c0_1 = arith.constant 0 : index
    %0 = vector.load %arg0[%c0, %c0_0, %c0_1] : memref<2x8x32xf32, #tpu.memory_space<vmem>>, vector<1x8x32xf32>
    %1 = vector.shape_cast %0 : vector<1x8x32xf32> to vector<8x32xf32>
    %c0_2 = arith.constant 0 : index
    %c0_3 = arith.constant 0 : index
    %c0_4 = arith.constant 0 : index
    %2 = vector.load %arg1[%c0_2, %c0_3, %c0_4] : memref<2x8x32xf32, #tpu.memory_space<vmem>>, vector<1x8x32xf32>
    %3 = vector.shape_cast %2 : vector<1x8x32xf32> to vector<8x32xf32>
    %c1 = arith.constant 1 : index
    %c0_5 = arith.constant 0 : index
    %c0_6 = arith.constant 0 : index
    %4 = vector.load %arg0[%c1, %c0_5, %c0_6] : memref<2x8x32xf32, #tpu.memory_space<vmem>>, vector<1x8x32xf32>
    %5 = vector.shape_cast %4 : vector<1x8x32xf32> to vector<8x32xf32>
    %c1_7 = arith.constant 1 : index
    %c0_8 = arith.constant 0 : index
    %c0_9 = arith.constant 0 : index
    %6 = vector.load %arg1[%c1_7, %c0_8, %c0_9] : memref<2x8x32xf32, #tpu.memory_space<vmem>>, vector<1x8x32xf32>
    %7 = vector.shape_cast %6 : vector<1x8x32xf32> to vector<8x32xf32>
    %8 = tpu.concatenate %1, %3, %5, %7 in 0 : vector<8x32xf32>, vector<8x32xf32>, vector<8x32xf32>, vector<8x32xf32> -> vector<32x32xf32>
    %c0_10 = arith.constant 0 : index
    %c0_11 = arith.constant 0 : index
    %9 = vector.load %arg2[%c0_10, %c0_11] : memref<32x96xf32, #tpu.memory_space<vmem>>, vector<32x96xf32>
    %cst = arith.constant dense<0.000000e+00> : vector<32x96xf32>
    %10 = tpu.matmul %8, %9, %cst {dimension_numbers = #tpu.dot_dimension_numbers<[1], [0], [0], [1], [0, 0, 1, 1], [], []>} : vector<32x32xf32>, vector<32x96xf32>, vector<32x96xf32> -> vector<32x96xf32>
    %11 = vector.extract_strided_slice %10 {offsets = [0, 0], sizes = [32, 32], strides = [1, 1]} : vector<32x96xf32> to vector<32x32xf32>
    %12 = vector.extract_strided_slice %10 {offsets = [0, 32], sizes = [32, 32], strides = [1, 1]} : vector<32x96xf32> to vector<32x32xf32>
    %13 = vector.extract_strided_slice %10 {offsets = [0, 64], sizes = [32, 32], strides = [1, 1]} : vector<32x96xf32> to vector<32x32xf32>
    %14 = vector.extract_strided_slice %11 {offsets = [0, 0], sizes = [16, 32], strides = [1, 1]} : vector<32x32xf32> to vector<16x32xf32>
    %15 = vector.extract_strided_slice %12 {offsets = [0, 0], sizes = [16, 32], strides = [1, 1]} : vector<32x32xf32> to vector<16x32xf32>
    %16 = vector.extract_strided_slice %13 {offsets = [0, 0], sizes = [16, 32], strides = [1, 1]} : vector<32x32xf32> to vector<16x32xf32>
    %cst_12 = arith.constant dense<0.000000e+00> : vector<16x16xf32>
    %17 = tpu.matmul %14, %15, %cst_12 {dimension_numbers = #tpu.dot_dimension_numbers<[1], [1], [0], [0], [0, 0, 1, 0], [], []>} : vector<16x32xf32>, vector<16x32xf32>, vector<16x16xf32> -> vector<16x16xf32>
    %cst_13 = arith.constant 0.176776692 : f32
    %18 = vector.broadcast %cst_13 : f32 to vector<16x16xf32>
    %19 = arith.mulf %17, %18 : vector<16x16xf32>
    %cst_14 = arith.constant dense<0xFF800000> : vector<16xf32>
    %20 = vector.multi_reduction <maximumf>, %19, %cst_14 [1] : vector<16x16xf32> to vector<16xf32>
    %21 = vector.shape_cast %20 : vector<16xf32> to vector<16x1xf32>
    %22 = vector.broadcast %21 : vector<16x1xf32> to vector<16x16xf32>
    %23 = arith.subf %19, %22 : vector<16x16xf32>
    %24 = math.exp %23 : vector<16x16xf32>
    %cst_15 = arith.constant dense<0.000000e+00> : vector<16xf32>
    %25 = vector.multi_reduction <add>, %24, %cst_15 [1] : vector<16x16xf32> to vector<16xf32>
    %26 = vector.shape_cast %25 : vector<16xf32> to vector<16x1xf32>
    %27 = tpu.reciprocal %26 : vector<16x1xf32> -> vector<16x1xf32>
    %28 = vector.broadcast %27 : vector<16x1xf32> to vector<16x16xf32>
    %29 = arith.mulf %24, %28 : vector<16x16xf32>
    %cst_16 = arith.constant dense<0.000000e+00> : vector<16x32xf32>
    %30 = tpu.matmul %29, %16, %cst_16 {dimension_numbers = #tpu.dot_dimension_numbers<[1], [0], [0], [1], [0, 0, 1, 1], [], []>} : vector<16x16xf32>, vector<16x32xf32>, vector<16x32xf32> -> vector<16x32xf32>
    %c0_17 = arith.constant 0 : index
    %c0_18 = arith.constant 0 : index
    %c0_19 = arith.constant 0 : index
    %31 = vector.load %arg3[%c0_17, %c0_18, %c0_19] : memref<2x16x32xf32, #tpu.memory_space<vmem>>, vector<1x16x32xf32>
    %32 = vector.shape_cast %31 : vector<1x16x32xf32> to vector<16x32xf32>
    %33 = vector.shape_cast %30 : vector<16x32xf32> to vector<1x16x32xf32>
    tpu.vector_store %arg3[%c0_17, %c0_18, %c0_19], %33 {strides = array<i32>} : memref<2x16x32xf32, #tpu.memory_space<vmem>>, vector<1x16x32xf32>,
    %34 = vector.extract_strided_slice %11 {offsets = [16, 0], sizes = [16, 32], strides = [1, 1]} : vector<32x32xf32> to vector<16x32xf32>
    %35 = vector.extract_strided_slice %12 {offsets = [16, 0], sizes = [16, 32], strides = [1, 1]} : vector<32x32xf32> to vector<16x32xf32>
    %36 = vector.extract_strided_slice %13 {offsets = [16, 0], sizes = [16, 32], strides = [1, 1]} : vector<32x32xf32> to vector<16x32xf32>
    %cst_20 = arith.constant dense<0.000000e+00> : vector<16x16xf32>
    %37 = tpu.matmul %34, %35, %cst_20 {dimension_numbers = #tpu.dot_dimension_numbers<[1], [1], [0], [0], [0, 0, 1, 0], [], []>} : vector<16x32xf32>, vector<16x32xf32>, vector<16x16xf32> -> vector<16x16xf32>
    %cst_21 = arith.constant 0.176776692 : f32
    %38 = vector.broadcast %cst_21 : f32 to vector<16x16xf32>
    %39 = arith.mulf %37, %38 : vector<16x16xf32>
    %cst_22 = arith.constant dense<0xFF800000> : vector<16xf32>
    %40 = vector.multi_reduction <maximumf>, %39, %cst_22 [1] : vector<16x16xf32> to vector<16xf32>
    %41 = vector.shape_cast %40 : vector<16xf32> to vector<16x1xf32>
    %42 = vector.broadcast %41 : vector<16x1xf32> to vector<16x16xf32>
    %43 = arith.subf %39, %42 : vector<16x16xf32>
    %44 = math.exp %43 : vector<16x16xf32>
    %cst_23 = arith.constant dense<0.000000e+00> : vector<16xf32>
    %45 = vector.multi_reduction <add>, %44, %cst_23 [1] : vector<16x16xf32> to vector<16xf32>
    %46 = vector.shape_cast %45 : vector<16xf32> to vector<16x1xf32>
    %47 = tpu.reciprocal %46 : vector<16x1xf32> -> vector<16x1xf32>
    %48 = vector.broadcast %47 : vector<16x1xf32> to vector<16x16xf32>
    %49 = arith.mulf %44, %48 : vector<16x16xf32>
    %cst_24 = arith.constant dense<0.000000e+00> : vector<16x32xf32>
    %50 = tpu.matmul %49, %36, %cst_24 {dimension_numbers = #tpu.dot_dimension_numbers<[1], [0], [0], [1], [0, 0, 1, 1], [], []>} : vector<16x16xf32>, vector<16x32xf32>, vector<16x32xf32> -> vector<16x32xf32>
    %c1_25 = arith.constant 1 : index
    %c0_26 = arith.constant 0 : index
    %c0_27 = arith.constant 0 : index
    %51 = vector.load %arg3[%c1_25, %c0_26, %c0_27] : memref<2x16x32xf32, #tpu.memory_space<vmem>>, vector<1x16x32xf32>
    %52 = vector.shape_cast %51 : vector<1x16x32xf32> to vector<16x32xf32>
    %53 = vector.shape_cast %50 : vector<16x32xf32> to vector<1x16x32xf32>
    tpu.vector_store %arg3[%c1_25, %c0_26, %c0_27], %53 {strides = array<i32>} : memref<2x16x32xf32, #tpu.memory_space<vmem>>, vector<1x16x32xf32>,
    return
  }
}

</mosaic_0001>

<llo_original>
// kernel: infomation_layer.1
$region0: #{infomation_layer.1}
  #allocation0 [shape = 'u32[]', space=smem, size = 0x4, offset = 0x4, fixed_abs, tag = 'smem constant byte address 0x4 - core index']
  #allocation1 [shape = 'u32[72,128]{1,0:T(1,128)}', space=vmem, size = 0x9000, scoped, tag = 'internal scratch']
  %s0 = inlined_call_operand.hbm [shape: f32[2,8,32], index: 0, kind: input, shape index: {}]
  %s1 = inlined_call_operand.hbm [shape: f32[2,8,32], index: 1, kind: input, shape index: {}]
  %s2 = inlined_call_operand.hbm [shape: f32[32,96], index: 2, kind: input, shape index: {}]
  %s3 = inlined_call_operand.hbm [shape: f32[2,16,32], index: 3, kind: output, shape index: {}]
  %s4 = sld [smem:[#allocation0]]
  $region34: #{infomation_layer.1} parent=0
    _
  %s6 = ssub.s32 1, %s4
  %s7 = scalar_select 0, %s6, %s4
  $region1: #{infomation_layer.1} parent=0
    #allocation2 [shape = 'u8[8192]{0}', space=vmem, size = 0x2000, scoped, tag = 'input window, operand 0, single buffered']
    #allocation3 [shape = 's32[1]{0}', space=sflag, size = 0x4, scoped, tag = 'scoped memory for infomation_layer.1']
    #allocation4 [shape = 's32[1]{0}', space=sflag, size = 0x4, scoped, tag = 'scoped memory for infomation_layer.1']
    #allocation5 [shape = 'u8[8192]{0}', space=vmem, size = 0x2000, scoped, tag = 'input window, operand 1, single buffered']
    #allocation6 [shape = 's32[1]{0}', space=sflag, size = 0x4, scoped, tag = 'scoped memory for infomation_layer.1']
    #allocation7 [shape = 'u8[16384]{0}', space=vmem, size = 0x4000, scoped, tag = 'input window, operand 2, single buffered']
    #allocation8 [shape = 'u8[16384]{0}', space=vmem, size = 0x4000, scoped, tag = 'output window, operand 0, single buffered']
    %8 = vsyncpa [#allocation3], 0
    %9 = vsyncpa [#allocation6], 0
    %10 = vsyncpa [#allocation4], 0
    // Predicated region
    $region2: #{infomation_layer.1} parent=1 // pred_check
      _
    $region3: #{infomation_layer.1} parent=1 // pred_check_branch
      %12 = sbr.rel (0) target = $region5
    $region4: #{infomation_layer.1} parent=1 // pred_region
      %14 = vsyncadd [#allocation3], 0
      %s15 = sshll.u32 %s0, 4
      %s16 = int_to_ptr.hbm [resolvable:$true] %s15
      %s17 = sshll.u32 [#allocation2], 4
      %s18 = int_to_ptr.vmem [resolvable:$true] %s17
      %23 = dma.hbm_to_vmem [thread:$0]  %s16, 256, %s18, [#allocation3], 128, 128, 8
    $region5: #{infomation_layer.1} parent=1 // pred_fallthru
      _
    // Predicated region
    $region6: #{infomation_layer.1} parent=1 // pred_check
      _
    $region7: #{infomation_layer.1} parent=1 // pred_check_branch
      %25 = sbr.rel (0) target = $region9
    $region8: #{infomation_layer.1} parent=1 // pred_region
      %27 = vsyncadd [#allocation6], 0
      %s28 = sshll.u32 %s1, 4
      %s29 = int_to_ptr.hbm [resolvable:$true] %s28
      %s30 = sshll.u32 [#allocation5], 4
      %s31 = int_to_ptr.vmem [resolvable:$true] %s30
      %36 = dma.hbm_to_vmem [thread:$0]  %s29, 256, %s31, [#allocation6], 128, 128, 8
    $region9: #{infomation_layer.1} parent=1 // pred_fallthru
      _
    // Predicated region
    $region10: #{infomation_layer.1} parent=1 // pred_check
      _
    $region11: #{infomation_layer.1} parent=1 // pred_check_branch
      %38 = sbr.rel (0) target = $region13
    $region12: #{infomation_layer.1} parent=1 // pred_region
      %40 = vsyncadd [#allocation6], 0
      %s41 = sshll.u32 %s2, 4
      %s42 = int_to_ptr.hbm [resolvable:$true] %s41
      %s43 = sshll.u32 [#allocation7], 4
      %s44 = int_to_ptr.vmem [resolvable:$true] %s43
      %49 = dma.hbm_to_vmem [thread:$0]  %s42, 512, %s44, [#allocation6], 128, 128, 8
    $region13: #{infomation_layer.1} parent=1 // pred_fallthru
      _
    // Predicated region
    $region14: #{infomation_layer.1} parent=1 // pred_check
      _
    $region15: #{infomation_layer.1} parent=1 // pred_check_branch
      %51 = sbr.rel (0) target = $region17
    $region16: #{infomation_layer.1} parent=1 // pred_region
      %53 = dma.done [#allocation3], 256
    $region17: #{infomation_layer.1} parent=1 // pred_fallthru
      _
    // Predicated region
    $region18: #{infomation_layer.1} parent=1 // pred_check
      _
    $region19: #{infomation_layer.1} parent=1 // pred_check_branch
      %55 = sbr.rel (0) target = $region21
    $region20: #{infomation_layer.1} parent=1 // pred_region
      %57 = dma.done [#allocation6], 256
    $region21: #{infomation_layer.1} parent=1 // pred_fallthru
      _
    // Predicated region
    $region22: #{infomation_layer.1} parent=1 // pred_check
      _
    $region23: #{infomation_layer.1} parent=1 // pred_check_branch
      %59 = sbr.rel (0) target = $region25
    $region24: #{infomation_layer.1} parent=1 // pred_region
      %61 = dma.done [#allocation6], 512
    $region25: #{infomation_layer.1} parent=1 // pred_fallthru
      _
    %v62 = vld [vmem:[#allocation2] sm:$0xff]
    %v63 = vld [vmem:[#allocation5] sm:$0xff]
    %s64 = scalar_lea.vmem [#allocation2], 8
    %v65 = vld [vmem:[%s64] sm:$0xff]
    %s66 = scalar_lea.vmem [#allocation5], 8
    %v67 = vld [vmem:[%s66] sm:$0xff]
    %v68 = vld [vmem:[#allocation7] sm:$0xff]
    %v69 = vld [vmem:[#allocation7 + $0x8] sm:$0xff]
    %v70 = vld [vmem:[#allocation7 + $0x10] sm:$0xff]
    %v71 = vld [vmem:[#allocation7 + $0x18] sm:$0xff]
    %vm72 = vcmask 261120
    %v74 = vsel %vm72, %v62, 0
    %v77 = vsel %vm72, %v63, 0
    %v80 = vsel %vm72, %v65, 0
    %v83 = vsel %vm72, %v67, 0
    %85 = vmatpush.msra.mxu0 0.0
    %86 = vmatpush.msra.mxu0 0.0
    %87 = vmatpush.msra.mxu0 0.0
    %88 = vmatpush.msra.mxu0 0.0
    %89 = vmatpush.msra.mxu0 0.0
    %90 = vmatpush.msra.mxu0 0.0
    %91 = vmatpush.msra.mxu0 0.0
    %92 = vmatpush.msra.mxu0 0.0
    %93 = vmatpush.msra.mxu0 0.0
    %94 = vmatpush.msra.mxu0 0.0
    %95 = vmatpush.msra.mxu0 0.0
    %96 = vmatpush.msra.mxu0 0.0
    %97 = vmatpush.msra.mxu0 %v71
    %98 = vmatpush.msra.mxu0 %v70
    %99 = vmatpush.msra.mxu0 %v69
    %100 = vmatpush.msra.mxu0 %v68
    %101 = vmatmul.f32.gmra.mxu0 %v74
    %v102 = vpop.f32.mrf.mxu0
    %v103 = vadd.f32 0.0, %v102
    %104 = vmatmul.f32.gmra.mxu0 %v77
    %v105 = vpop.f32.mrf.mxu0
    %v106 = vadd.f32 0.0, %v105
    %107 = vmatmul.f32.gmra.mxu0 %v80
    %v108 = vpop.f32.mrf.mxu0
    %v109 = vadd.f32 0.0, %v108
    %110 = vmatmul.f32.gmra.mxu0 %v83
    %v111 = vpop.f32.mrf.mxu0
    %v112 = vadd.f32 0.0, %v111
    %113 = vdwg.mxu0
    %116 = vrot.lane.b32.xlu0 %v103, 96
    %v117 = vpop.permute.xlu0 %116
    %118 = vrot.lane.b32.xlu0 %v106, 96
    %v119 = vpop.permute.xlu0 %118
    %v120 = vsel %vm72, %v103, 0
    %v122 = vsel %vm72, %v106, 0
    %v124 = vsel %vm72, %v117, 0
    %v126 = vsel %vm72, %v119, 0
    %128 = vmatpush.xpose.msra.mxu0 0.0
    %129 = vmatpush.xpose.msra.mxu0 0.0
    %130 = vmatpush.xpose.msra.mxu0 0.0
    %131 = vmatpush.xpose.msra.mxu0 0.0
    %132 = vmatpush.xpose.msra.mxu0 0.0
    %133 = vmatpush.xpose.msra.mxu0 0.0
    %134 = vmatpush.xpose.msra.mxu0 0.0
    %135 = vmatpush.xpose.msra.mxu0 0.0
    %136 = vmatpush.xpose.msra.mxu0 0.0
    %137 = vmatpush.xpose.msra.mxu0 0.0
    %138 = vmatpush.xpose.msra.mxu0 0.0
    %139 = vmatpush.xpose.msra.mxu0 0.0
    %140 = vmatpush.xpose.msra.mxu0 0.0
    %141 = vmatpush.xpose.msra.mxu0 0.0
    %142 = vmatpush.xpose.msra.mxu0 %v126
    %143 = vmatpush.xpose.msra.mxu0 %v124
    %144 = vmatmul.f32.gmra.mxu0 %v120
    %v145 = vpop.f32.mrf.mxu0
    %v146 = vadd.f32 0.0, %v145
    %147 = vmatmul.f32.gmra.mxu0 %v122
    %v148 = vpop.f32.mrf.mxu0
    %v149 = vadd.f32 0.0, %v148
    %150 = vdwg.mxu0
    %v151 = vmul.f32 %v146, 0.17677669
    %v152 = vmul.f32 %v149, 0.17677669
    %vm153 = vcmask 130048
    %v154 = vsel %vm153, %v151, -inf
    %155 = vmax.xlane.f32.xlu0 %v154
    %v156 = vpop.xlane.xlu0 %155
    %v157 = vsel %vm153, %v152, -inf
    %158 = vmax.xlane.f32.xlu0 %v157
    %v159 = vpop.xlane.xlu0 %158
    %v160 = vsub.f32 %v151, %v156
    %v161 = vsub.f32 %v152, %v159
    %v162 = vmul.f32 %v160, 1.442695
    %v163 = vpow.pop %v162
    %v164 = vmul.f32 %v161, 1.442695
    %v165 = vpow.pop %v164
    %v166 = vsel %vm153, %v163, 0.0
    %167 = vadd.xlane.f32.xlu0 %v166
    %v168 = vpop.xlane.xlu0 %167
    %v169 = vsel %vm153, %v165, 0.0
    %170 = vadd.xlane.f32.xlu0 %v169
    %v171 = vpop.xlane.xlu0 %170
    %v172 = vrcp.pop %v168
    %v173 = vmul.f32 %v168, %v172
    %v174 = vsub.f32 1.0, %v173
    %v175 = vmul.f32 %v172, %v174
    %v176 = vadd.f32 %v172, %v175
    %vm177 = vweird.f32 %v168
    %vm178 = vweird.f32 %v172
    %vm179 = vmor %vm177, %vm178
    %v180 = vsel %vm179, %v172, %v176
    %v181 = vand.u32 2147483647, %v168
    %vm182 = vcmp.eq.f32.partialorder %v181, 8.507059e+37
    %v183 = vand.u32 %v168, 2147483648
    %v184 = vor.u32 1.1754944e-38, %v183
    %v185 = vsel %vm182, %v184, %v180
    %v186 = vrcp.pop %v171
    %v187 = vmul.f32 %v171, %v186
    %v188 = vsub.f32 1.0, %v187
    %v189 = vmul.f32 %v186, %v188
    %v190 = vadd.f32 %v186, %v189
    %vm191 = vweird.f32 %v171
    %vm192 = vweird.f32 %v186
    %vm193 = vmor %vm191, %vm192
    %v194 = vsel %vm193, %v186, %v190
    %v195 = vand.u32 2147483647, %v171
    %vm196 = vcmp.eq.f32.partialorder %v195, 8.507059e+37
    %v197 = vand.u32 %v171, 2147483648
    %v198 = vor.u32 1.1754944e-38, %v197
    %v199 = vsel %vm196, %v198, %v194
    %v200 = vmul.f32 %v163, %v185
    %v201 = vmul.f32 %v165, %v199
    %202 = vrot.lane.b32.xlu0 %v103, 64
    %v203 = vpop.permute.xlu0 %202
    %204 = vrot.lane.b32.xlu0 %v106, 64
    %v205 = vpop.permute.xlu0 %204
    %v209 = vsel %vm153, %v200, 0
    %v212 = vsel %vm153, %v201, 0
    %214 = vmatpush.msra.mxu0 0.0
    %215 = vmatpush.msra.mxu0 0.0
    %216 = vmatpush.msra.mxu0 0.0
    %217 = vmatpush.msra.mxu0 0.0
    %218 = vmatpush.msra.mxu0 0.0
    %219 = vmatpush.msra.mxu0 0.0
    %220 = vmatpush.msra.mxu0 0.0
    %221 = vmatpush.msra.mxu0 0.0
    %222 = vmatpush.msra.mxu0 0.0
    %223 = vmatpush.msra.mxu0 0.0
    %224 = vmatpush.msra.mxu0 0.0
    %225 = vmatpush.msra.mxu0 0.0
    %226 = vmatpush.msra.mxu0 0.0
    %227 = vmatpush.msra.mxu0 0.0
    %228 = vmatpush.msra.mxu0 %v205
    %229 = vmatpush.msra.mxu0 %v203
    %230 = vmatmul.f32.gmra.mxu0 %v209
    %v231 = vpop.f32.mrf.mxu0
    %v232 = vadd.f32 0.0, %v231
    %233 = vmatmul.f32.gmra.mxu0 %v212
    %v234 = vpop.f32.mrf.mxu0
    %v235 = vadd.f32 0.0, %v234
    %236 = vdwg.mxu0
    %237 = vst.msk [vmem:[#allocation8] sm:$0xff] %vm72, %v232
    %238 = vst.msk [vmem:[#allocation8 + $0x8] sm:$0xff] %vm72, %v235
    %241 = vrot.lane.b32.xlu0 %v109, 96
    %v242 = vpop.permute.xlu0 %241
    %243 = vrot.lane.b32.xlu0 %v112, 96
    %v244 = vpop.permute.xlu0 %243
    %v245 = vsel %vm72, %v109, 0
    %v247 = vsel %vm72, %v112, 0
    %v249 = vsel %vm72, %v242, 0
    %v251 = vsel %vm72, %v244, 0
    %253 = vmatpush.xpose.msra.mxu0 0.0
    %254 = vmatpush.xpose.msra.mxu0 0.0
    %255 = vmatpush.xpose.msra.mxu0 0.0
    %256 = vmatpush.xpose.msra.mxu0 0.0
    %257 = vmatpush.xpose.msra.mxu0 0.0
    %258 = vmatpush.xpose.msra.mxu0 0.0
    %259 = vmatpush.xpose.msra.mxu0 0.0
    %260 = vmatpush.xpose.msra.mxu0 0.0
    %261 = vmatpush.xpose.msra.mxu0 0.0
    %262 = vmatpush.xpose.msra.mxu0 0.0
    %263 = vmatpush.xpose.msra.mxu0 0.0
    %264 = vmatpush.xpose.msra.mxu0 0.0
    %265 = vmatpush.xpose.msra.mxu0 0.0
    %266 = vmatpush.xpose.msra.mxu0 0.0
    %267 = vmatpush.xpose.msra.mxu0 %v251
    %268 = vmatpush.xpose.msra.mxu0 %v249
    %269 = vmatmul.f32.gmra.mxu0 %v245
    %v270 = vpop.f32.mrf.mxu0
    %v271 = vadd.f32 0.0, %v270
    %272 = vmatmul.f32.gmra.mxu0 %v247
    %v273 = vpop.f32.mrf.mxu0
    %v274 = vadd.f32 0.0, %v273
    %275 = vdwg.mxu0
    %v276 = vmul.f32 %v271, 0.17677669
    %v277 = vmul.f32 %v274, 0.17677669
    %v278 = vsel %vm153, %v276, -inf
    %279 = vmax.xlane.f32.xlu0 %v278
    %v280 = vpop.xlane.xlu0 %279
    %v281 = vsel %vm153, %v277, -inf
    %282 = vmax.xlane.f32.xlu0 %v281
    %v283 = vpop.xlane.xlu0 %282
    %v284 = vsub.f32 %v276, %v280
    %v285 = vsub.f32 %v277, %v283
    %v286 = vmul.f32 %v284, 1.442695
    %v287 = vpow.pop %v286
    %v288 = vmul.f32 %v285, 1.442695
    %v289 = vpow.pop %v288
    %v290 = vsel %vm153, %v287, 0.0
    %291 = vadd.xlane.f32.xlu0 %v290
    %v292 = vpop.xlane.xlu0 %291
    %v293 = vsel %vm153, %v289, 0.0
    %294 = vadd.xlane.f32.xlu0 %v293
    %v295 = vpop.xlane.xlu0 %294
    %v296 = vrcp.pop %v292
    %v297 = vmul.f32 %v292, %v296
    %v298 = vsub.f32 1.0, %v297
    %v299 = vmul.f32 %v296, %v298
    %v300 = vadd.f32 %v296, %v299
    %vm301 = vweird.f32 %v292
    %vm302 = vweird.f32 %v296
    %vm303 = vmor %vm301, %vm302
    %v304 = vsel %vm303, %v296, %v300
    %v305 = vand.u32 2147483647, %v292
    %vm306 = vcmp.eq.f32.partialorder %v305, 8.507059e+37
    %v307 = vand.u32 %v292, 2147483648
    %v308 = vor.u32 1.1754944e-38, %v307
    %v309 = vsel %vm306, %v308, %v304
    %v310 = vrcp.pop %v295
    %v311 = vmul.f32 %v295, %v310
    %v312 = vsub.f32 1.0, %v311
    %v313 = vmul.f32 %v310, %v312
    %v314 = vadd.f32 %v310, %v313
    %vm315 = vweird.f32 %v295
    %vm316 = vweird.f32 %v310
    %vm317 = vmor %vm315, %vm316
    %v318 = vsel %vm317, %v310, %v314
    %v319 = vand.u32 2147483647, %v295
    %vm320 = vcmp.eq.f32.partialorder %v319, 8.507059e+37
    %v321 = vand.u32 %v295, 2147483648
    %v322 = vor.u32 1.1754944e-38, %v321
    %v323 = vsel %vm320, %v322, %v318
    %v324 = vmul.f32 %v287, %v309
    %v325 = vmul.f32 %v289, %v323
    %326 = vrot.lane.b32.xlu0 %v109, 64
    %v327 = vpop.permute.xlu0 %326
    %328 = vrot.lane.b32.xlu0 %v112, 64
    %v329 = vpop.permute.xlu0 %328
    %v333 = vsel %vm153, %v324, 0
    %v336 = vsel %vm153, %v325, 0
    %338 = vmatpush.msra.mxu0 0.0
    %339 = vmatpush.msra.mxu0 0.0
    %340 = vmatpush.msra.mxu0 0.0
    %341 = vmatpush.msra.mxu0 0.0
    %342 = vmatpush.msra.mxu0 0.0
    %343 = vmatpush.msra.mxu0 0.0
    %344 = vmatpush.msra.mxu0 0.0
    %345 = vmatpush.msra.mxu0 0.0
    %346 = vmatpush.msra.mxu0 0.0
    %347 = vmatpush.msra.mxu0 0.0
    %348 = vmatpush.msra.mxu0 0.0
    %349 = vmatpush.msra.mxu0 0.0
    %350 = vmatpush.msra.mxu0 0.0
    %351 = vmatpush.msra.mxu0 0.0
    %352 = vmatpush.msra.mxu0 %v329
    %353 = vmatpush.msra.mxu0 %v327
    %354 = vmatmul.f32.gmra.mxu0 %v333
    %v355 = vpop.f32.mrf.mxu0
    %v356 = vadd.f32 0.0, %v355
    %357 = vmatmul.f32.gmra.mxu0 %v336
    %v358 = vpop.f32.mrf.mxu0
    %v359 = vadd.f32 0.0, %v358
    %360 = vdwg.mxu0
    %s361 = scalar_lea.vmem [#allocation8], 16
    %362 = vst.msk [vmem:[%s361] sm:$0xff] %vm72, %v356
    %363 = vst.msk [vmem:[%s361 + $0x8] sm:$0xff] %vm72, %v359
    // Predicated region
    $region26: #{infomation_layer.1} parent=1 // pred_check
      _
    $region27: #{infomation_layer.1} parent=1 // pred_check_branch
      %365 = sbr.rel (0) target = $region29
    $region28: #{infomation_layer.1} parent=1 // pred_region
      %367 = vsyncadd [#allocation4], 0
      %s368 = sshll.u32 [#allocation8], 4
      %s369 = int_to_ptr.vmem [resolvable:$true] %s368
      %s370 = sshll.u32 %s3, 4
      %s371 = int_to_ptr.hbm [resolvable:$true] %s370
      %376 = dma.vmem_to_hbm [thread:$0]  %s369, 512, %s371, [#allocation4], 128, 128, 8
    $region29: #{infomation_layer.1} parent=1 // pred_fallthru
      _
    // Predicated region
    $region30: #{infomation_layer.1} parent=1 // pred_check
      _
    $region31: #{infomation_layer.1} parent=1 // pred_check_branch
      %378 = sbr.rel (0) target = $region33
    $region32: #{infomation_layer.1} parent=1 // pred_region
      %380 = dma.done [#allocation4], 512
    $region33: #{infomation_layer.1} parent=1 // pred_fallthru
      _
    %381 = vsyncpa [#allocation3], 1
    %382 = vsyncpa [#allocation6], 1
    %383 = vsyncpa [#allocation4], 1

</llo_original>
